<compile_context>
chip_gen: v6e
topology: v6e:2x2x1
jax: 0.10.0
libtpu: 0.0.40
codegen_flags: <defaults>
</compile_context>

<pallas_src>
import functools

import jax
import jax.numpy as jnp
from jax.experimental import pallas as pl
from jax.experimental.pallas import tpu as pltpu


def _round_up(x, m):
    return ((x + m - 1) // m) * m


def _vmem_limit_bytes():
    """Generation-aware scoped-VMEM budget.

    Returns (vmem_limit_bytes, small_vmem_two_core). v7x has 64 MiB physical
    VMEM per TensorCore and 2 TCs/chip; v5e/v6e have 128 MiB and 1 TC.
    """
    try:
        cap = pltpu.get_tpu_info().vmem_capacity_bytes
    except Exception:
        cap = 64 * 1024 * 1024                      # be conservative (v7x-like)
    if cap >= 96 * 1024 * 1024:                     # v5e / v6e: 128 MiB per core
        return 64 * 1024 * 1024, False
    return 36 * 1024 * 1024, True                   # v7x: 64 MiB per TensorCore


def _contrastive_loss_kernel(params_ref, labels_ref, errors_ref, out_ref,
                             m_ref, l_ref, t_ref, *,
                             dweight, batch, n_class, block_rows, p_chunk,
                             col_masked, labels_resident):
    """One (row-tile, class-chunk) grid step of the streaming loss."""
    i = pl.program_id(0)                              # row-tile index (parallel)
    pc = pl.program_id(1)                             # class-chunk index (arbitrary)

    neg_inv_temp = params_ref[0]                      # -1 / temp   (SMEM)
    log_scale = params_ref[1]                         # log(scale)  (SMEM)

    @pl.when(pc == 0)
    def _init():
        m_ref[...] = jnp.full_like(m_ref, -jnp.inf)   # running max of logits
        l_ref[...] = jnp.zeros_like(l_ref)            # running sum exp(logits - m)
        t_ref[...] = jnp.zeros_like(t_ref)            # one-hot gather accumulator

    errors = errors_ref[...].astype(jnp.float32)      # [TB, PC], f32 in-kernel
    tb, pcw = errors.shape

    # logits = scale * exp(-errors/temp) == exp(errors*(-1/temp) + log(scale))
    z = errors * neg_inv_temp + log_scale             # [TB, PC]
    logits = jnp.exp(z)                               # EUP pass 1

    col = jax.lax.broadcasted_iota(jnp.int32, (tb, pcw), 1) + pc * p_chunk
    valid = col < n_class

    # Chunk max of logits taken as exp(max(z)) so the XLU max runs concurrently
    # with the EUP exp instead of serializing after it (exp is monotone).
    z_for_max = jnp.where(valid, z, -jnp.inf) if col_masked else z
    m_chunk = jnp.exp(jnp.max(z_for_max, axis=-1, keepdims=True))   # [TB, 1]

    m_prev = m_ref[...]
    m_new = jnp.maximum(m_prev, m_chunk)
    p = jnp.exp(logits - m_new)                       # EUP pass 2
    if col_masked:
        p = jnp.where(valid, p, 0.0)                  # padded class columns -> 0
    l_ref[...] = (l_ref[...] * jnp.exp(m_prev - m_new)
                  + jnp.sum(p, axis=-1, keepdims=True))
    m_ref[...] = m_new

    # Fused one-hot gather: logits[i, y_i] - dweight * errors[i, y_i].
    if labels_resident:
        start = pl.multiple_of(i * block_rows, 8)
        labels = labels_ref[pl.ds(start, block_rows), :]             # [TB, 1]
    else:
        labels = labels_ref[...]                                     # [TB, 1]
    onehot = col == labels                                           # [TB, PC]
    if dweight != 0.0:
        gathered = logits - jnp.float32(dweight) * errors
    else:
        gathered = logits
    t_ref[...] += jnp.sum(jnp.where(onehot, gathered, 0.0), axis=-1, keepdims=True)

    @pl.when(pc == pl.num_programs(1) - 1)
    def _finalize():
        lse = m_ref[...] + jnp.log(l_ref[...])        # log-sum-exp over logits
        contrib = lse - t_ref[...]                    # per-row CE + dweight term
        row = i * block_rows + jax.lax.broadcasted_iota(
            jnp.int32, (block_rows, 1), 0)
        contrib = jnp.where(row < batch, contrib, 0.0)   # mask batch padding
        out_ref[...] = jnp.broadcast_to(jnp.sum(contrib), (8, 128)).astype(jnp.float32)


def contrastive_loss(errors, labels=None, *, temp=0.07, scale=4.0, dweight=0.0,
                     block_rows=None, p_chunk=None):
    """Pallas TPU implementation of ContrastiveLoss.forward."""
    B, P = errors.shape
    if labels is None:
        labels = jnp.arange(B, dtype=jnp.int32)       # identity-mask targets
    labels = labels.astype(jnp.int32)

    itemsize = jnp.dtype(errors.dtype).itemsize
    vmem_limit, two_core = _vmem_limit_bytes()

    rows_padded = _round_up(B, 8)
    p_padded128 = _round_up(P, 128)

    # ---- class-axis chunk (trailing "arbitrary" reduction axis) -------------
    if p_chunk is None:
        p_chunk = min(p_padded128, 2048)
    p_chunk = min(max(128, _round_up(int(p_chunk), 128)), p_padded128)
    Pp = _round_up(P, p_chunk)
    num_p_chunks = Pp // p_chunk

    # ---- labels placement: one resident VMEM copy unless B is huge ----------
    labels_bytes_resident = rows_padded * 128 * 4     # (Bp, 1) int32 lane-pads x128
    labels_resident = labels_bytes_resident <= vmem_limit // 8

    # ---- row tile: 2 double-buffered input tiles + ~4 full-tile f32 temps
    #      (cast/logits/exp/gather) must fit in ~60% of the scoped VMEM limit --
    if block_rows is None:
        budget = int(0.6 * vmem_limit)
        if labels_resident:
            budget -= labels_bytes_resident
        per_row = p_chunk * (2 * itemsize + 4 * 4)
        block_rows = max(8, min(1024, budget // per_row))
    block_rows = max(8, (int(block_rows) // 8) * 8)
    if two_core and rows_padded >= 16:
        # v7x megacore: keep >= 2 row tiles so both TensorCores get work.
        block_rows = min(block_rows, _round_up((rows_padded + 1) // 2, 8))
    block_rows = min(block_rows, rows_padded)

    Bp = _round_up(B, block_rows)
    num_row_tiles = Bp // block_rows

    if Bp != B or Pp != P:                            # pad; masked in-kernel
        errors = jnp.pad(errors, ((0, Bp - B), (0, Pp - P)))
    if Bp != B:
        labels = jnp.pad(labels, (0, Bp - B))
    labels2d = labels.reshape(Bp, 1)

    # Precompute the scalar params once: [-1/temp, log(scale)].
    params = jnp.stack([
        -1.0 / jnp.asarray(temp, jnp.float32),
        jnp.log(jnp.asarray(scale, jnp.float32)),
    ]).astype(jnp.float32)

    kernel = functools.partial(
        _contrastive_loss_kernel,
        dweight=float(dweight), batch=B, n_class=P,
        block_rows=block_rows, p_chunk=p_chunk,
        col_masked=(Pp != P), labels_resident=labels_resident)

    if labels_resident:
        labels_spec = pl.BlockSpec(memory_space=pltpu.MemorySpace.VMEM)
    else:
        labels_spec = pl.BlockSpec((block_rows, 1), lambda i, pc: (i, 0))

    partials = pl.pallas_call(
        kernel,
        out_shape=jax.ShapeDtypeStruct((num_row_tiles * 8, 128), jnp.float32),
        grid=(num_row_tiles, num_p_chunks),
        in_specs=[
            pl.BlockSpec(memory_space=pltpu.MemorySpace.SMEM),            # params (2,)
            labels_spec,                                                  # labels
            pl.BlockSpec((block_rows, p_chunk), lambda i, pc: (i, pc)),   # errors tile
        ],
        out_specs=pl.BlockSpec((8, 128), lambda i, pc: (i, 0)),           # per-tile partial
        scratch_shapes=[
            pltpu.VMEM((block_rows, 1), jnp.float32),   # running max m
            pltpu.VMEM((block_rows, 1), jnp.float32),   # running sum l
            pltpu.VMEM((block_rows, 1), jnp.float32),   # target gather t
        ],
        compiler_params=pltpu.CompilerParams(
            dimension_semantics=("parallel", "arbitrary"),
            vmem_limit_bytes=vmem_limit,
        ),
    )(params, labels2d, errors)

    total = jnp.sum(partials[::8, 0])                 # one partial per row tile
    return total / B


def _reference_loss(errors, labels=None, *, temp=0.07, scale=4.0, dweight=0.0):
    """Pure-JAX reference (mirrors torch.nn.functional.cross_entropy)."""
    errors = errors.astype(jnp.float32)
    B, P = errors.shape
    if labels is None:
        labels = jnp.arange(B, dtype=jnp.int32)
    logits = scale * jnp.exp(-errors / temp)
    logp = jax.nn.log_softmax(logits, axis=-1)
    ce = -jnp.mean(logp[jnp.arange(B), labels])
    return ce + dweight * jnp.mean(errors[jnp.arange(B), labels])


if __name__ == "__main__":
    # Module __init__ defaults: temp=0.07, scale=4.0, dweight=0 (nn.Parameters
    # in PyTorch; plain scalars here).
    key = jax.random.PRNGKey(0)
    k1, k2, k3, k4, k5 = jax.random.split(key, 5)

    # Case 1: labels=None (diagonal targets), square errors, f32 input.
    B1, P1 = 8, 8
    errors1 = jax.random.uniform(k1, (B1, P1), dtype=jnp.float32)
    loss1 = jax.block_until_ready(
        contrastive_loss(errors1, labels=None, temp=0.07, scale=4.0, dweight=0.0))
    ref1 = _reference_loss(errors1, labels=None, temp=0.07, scale=4.0, dweight=0.0)
    assert jnp.allclose(loss1, ref1, rtol=1e-5, atol=1e-5), (loss1, ref1)

    # Case 2: explicit labels, non-square, bf16 input, row padding + multi row
    # tiles, dweight != 0.
    B2, P2 = 20, 16
    errors2 = jax.random.uniform(k2, (B2, P2), dtype=jnp.float32).astype(jnp.bfloat16)
    labels2 = jax.random.randint(k3, (B2,), 0, P2, dtype=jnp.int32)
    loss2 = jax.block_until_ready(
        contrastive_loss(errors2, labels=labels2, temp=0.07, scale=4.0,
                         dweight=0.5, block_rows=8))
    ref2 = _reference_loss(errors2, labels=labels2, temp=0.07, scale=4.0, dweight=0.5)
    assert jnp.allclose(loss2, ref2, rtol=1e-4, atol=1e-4), (loss2, ref2)

    # Case 3: exercises the streaming-logsumexp path — multiple class chunks
    # (forced small p_chunk), padded class columns, multiple row tiles, dweight.
    B3, P3 = 24, 300
    errors3 = jax.random.uniform(k4, (B3, P3), dtype=jnp.float32)
    labels3 = jax.random.randint(k5, (B3,), 0, P3, dtype=jnp.int32)
    loss3 = jax.block_until_ready(
        contrastive_loss(errors3, labels=labels3, temp=0.07, scale=4.0,
                         dweight=0.25, block_rows=16, p_chunk=128))
    ref3 = _reference_loss(errors3, labels=labels3, temp=0.07, scale=4.0, dweight=0.25)
    assert jnp.allclose(loss3, ref3, rtol=1e-4, atol=1e-4), (loss3, ref3)

    print("KERNEL_OK")
</pallas_src>

<mosaic_0001>
module attributes {stable_mosaic.version = 11 : i64} {
  func.func @_contrastive_loss_kernel(%arg0: i32, %arg1: i32, %arg2: memref<2xf32, #tpu.memory_space<smem>>, %arg3: memref<8x1xi32, #tpu.memory_space<vmem>>, %arg4: memref<8x128xf32, #tpu.memory_space<vmem>>, %arg5: memref<8x128xf32, #tpu.memory_space<vmem>>, %arg6: memref<8x1xf32, #tpu.memory_space<vmem>>, %arg7: memref<8x1xf32, #tpu.memory_space<vmem>>, %arg8: memref<8x1xf32, #tpu.memory_space<vmem>>) attributes {dimension_semantics = [#tpu.dimension_semantics<parallel>, #tpu.dimension_semantics<arbitrary>], iteration_bounds = array<i64: 1, 1>, scalar_prefetch = 0 : i64, scratch_operands = 3 : i64, tpu.core_type = #tpu.core_type<tc>, window_params = [{transform_indices = @transform_0, window_bounds = array<i64: 2>}, {pipeline_mode = #tpu.pipeline_mode<synchronous>, transform_indices = @transform_1, window_bounds = array<i64: 8, 1>}, {transform_indices = @transform_2, window_bounds = array<i64: 8, 128>}, {transform_indices = @transform_3, window_bounds = array<i64: 8, 128>}]} {
    %c0 = arith.constant 0 : index
    %0 = memref.load %arg2[%c0] : memref<2xf32, #tpu.memory_space<smem>>
    %c1 = arith.constant 1 : index
    %1 = memref.load %arg2[%c1] : memref<2xf32, #tpu.memory_space<smem>>
    %c0_i32 = arith.constant 0 : i32
    %2 = arith.cmpi eq, %arg1, %c0_i32 : i32
    %3 = arith.extui %2 : i1 to i32
    %c0_i32_0 = arith.constant 0 : i32
    %4 = arith.cmpi ne, %3, %c0_i32_0 : i32
    scf.if %4 {
      %cst_24 = arith.constant 0xFF800000 : f32
      %54 = vector.broadcast %cst_24 : f32 to vector<8x1xf32>
      %c0_25 = arith.constant 0 : index
      %c0_26 = arith.constant 0 : index
      %55 = vector.load %arg6[%c0_25, %c0_26] : memref<8x1xf32, #tpu.memory_space<vmem>>, vector<8x1xf32>
      tpu.vector_store %arg6[%c0_25, %c0_26], %54 {strides = array<i32>} : memref<8x1xf32, #tpu.memory_space<vmem>>, vector<8x1xf32>,
      %cst_27 = arith.constant 0.000000e+00 : f32
      %56 = vector.broadcast %cst_27 : f32 to vector<8x1xf32>
      %c0_28 = arith.constant 0 : index
      %c0_29 = arith.constant 0 : index
      %57 = vector.load %arg7[%c0_28, %c0_29] : memref<8x1xf32, #tpu.memory_space<vmem>>, vector<8x1xf32>
      tpu.vector_store %arg7[%c0_28, %c0_29], %56 {strides = array<i32>} : memref<8x1xf32, #tpu.memory_space<vmem>>, vector<8x1xf32>,
      %cst_30 = arith.constant 0.000000e+00 : f32
      %58 = vector.broadcast %cst_30 : f32 to vector<8x1xf32>
      %c0_31 = arith.constant 0 : index
      %c0_32 = arith.constant 0 : index
      %59 = vector.load %arg8[%c0_31, %c0_32] : memref<8x1xf32, #tpu.memory_space<vmem>>, vector<8x1xf32>
      tpu.vector_store %arg8[%c0_31, %c0_32], %58 {strides = array<i32>} : memref<8x1xf32, #tpu.memory_space<vmem>>, vector<8x1xf32>,
    } else {
    }
    %c0_1 = arith.constant 0 : index
    %c0_2 = arith.constant 0 : index
    %5 = vector.load %arg4[%c0_1, %c0_2] : memref<8x128xf32, #tpu.memory_space<vmem>>, vector<8x128xf32>
    %6 = vector.broadcast %0 : f32 to vector<8x128xf32>
    %7 = arith.mulf %5, %6 : vector<8x128xf32>
    %8 = vector.broadcast %1 : f32 to vector<8x128xf32>
    %9 = arith.addf %7, %8 : vector<8x128xf32>
    %10 = math.exp %9 : vector<8x128xf32>
    %11 = tpu.iota {dimensions = array<i32: 1>} : vector<8x128xi32>
    %c128_i32 = arith.constant 128 : i32
    %12 = arith.muli %arg1, %c128_i32 : i32
    %13 = vector.broadcast %12 : i32 to vector<8x128xi32>
    %14 = arith.addi %11, %13 : vector<8x128xi32>
    %c8_i32 = arith.constant 8 : i32
    %15 = vector.broadcast %c8_i32 : i32 to vector<8x128xi32>
    %16 = arith.cmpi slt, %14, %15 : vector<8x128xi32>
    %cst = arith.constant 0xFF800000 : f32
    %17 = vector.broadcast %cst : f32 to vector<8x128xf32>
    %18 = arith.select %16, %9, %17 : vector<8x128xi1>, vector<8x128xf32>
    %cst_3 = arith.constant dense<0xFF800000> : vector<8xf32>
    %19 = vector.multi_reduction <maximumf>, %18, %cst_3 [1] : vector<8x128xf32> to vector<8xf32>
    %20 = vector.shape_cast %19 : vector<8xf32> to vector<8x1xf32>
    %21 = math.exp %20 : vector<8x1xf32>
    %c0_4 = arith.constant 0 : index
    %c0_5 = arith.constant 0 : index
    %22 = vector.load %arg6[%c0_4, %c0_5] : memref<8x1xf32, #tpu.memory_space<vmem>>, vector<8x1xf32>
    %23 = arith.maximumf %22, %21 : vector<8x1xf32>
    %24 = vector.broadcast %23 : vector<8x1xf32> to vector<8x128xf32>
    %25 = arith.subf %10, %24 : vector<8x128xf32>
    %26 = math.exp %25 : vector<8x128xf32>
    %cst_6 = arith.constant 0.000000e+00 : f32
    %27 = vector.broadcast %cst_6 : f32 to vector<8x128xf32>
    %28 = arith.select %16, %26, %27 : vector<8x128xi1>, vector<8x128xf32>
    %c0_7 = arith.constant 0 : index
    %c0_8 = arith.constant 0 : index
    %29 = vector.load %arg7[%c0_7, %c0_8] : memref<8x1xf32, #tpu.memory_space<vmem>>, vector<8x1xf32>
    %30 = arith.subf %22, %23 : vector<8x1xf32>
    %31 = math.exp %30 : vector<8x1xf32>
    %32 = arith.mulf %29, %31 : vector<8x1xf32>
    %cst_9 = arith.constant dense<0.000000e+00> : vector<8xf32>
    %33 = vector.multi_reduction <add>, %28, %cst_9 [1] : vector<8x128xf32> to vector<8xf32>
    %34 = vector.shape_cast %33 : vector<8xf32> to vector<8x1xf32>
    %35 = arith.addf %32, %34 : vector<8x1xf32>
    %c0_10 = arith.constant 0 : index
    %c0_11 = arith.constant 0 : index
    %36 = vector.load %arg7[%c0_10, %c0_11] : memref<8x1xf32, #tpu.memory_space<vmem>>, vector<8x1xf32>
    tpu.vector_store %arg7[%c0_10, %c0_11], %35 {strides = array<i32>} : memref<8x1xf32, #tpu.memory_space<vmem>>, vector<8x1xf32>,
    %c0_12 = arith.constant 0 : index
    %c0_13 = arith.constant 0 : index
    %37 = vector.load %arg6[%c0_12, %c0_13] : memref<8x1xf32, #tpu.memory_space<vmem>>, vector<8x1xf32>
    tpu.vector_store %arg6[%c0_12, %c0_13], %23 {strides = array<i32>} : memref<8x1xf32, #tpu.memory_space<vmem>>, vector<8x1xf32>,
    %c8_i32_14 = arith.constant 8 : i32
    %38 = arith.muli %arg0, %c8_i32_14 : i32
    %39 = tpu.assume_multiple %38, 8 : i32
    %40 = arith.index_cast %39 : i32 to index
    %c0_15 = arith.constant 0 : index
    %41 = vector.load %arg3[%40, %c0_15] : memref<8x1xi32, #tpu.memory_space<vmem>>, vector<8x1xi32>
    %42 = vector.broadcast %41 : vector<8x1xi32> to vector<8x128xi32>
    %43 = arith.cmpi eq, %14, %42 : vector<8x128xi32>
    %c0_16 = arith.constant 0 : index
    %c0_17 = arith.constant 0 : index
    %44 = vector.load %arg8[%c0_16, %c0_17] : memref<8x1xf32, #tpu.memory_space<vmem>>, vector<8x1xf32>
    %cst_18 = arith.constant 0.000000e+00 : f32
    %45 = vector.broadcast %cst_18 : f32 to vector<8x128xf32>
    %46 = arith.select %43, %10, %45 : vector<8x128xi1>, vector<8x128xf32>
    %cst_19 = arith.constant dense<0.000000e+00> : vector<8xf32>
    %47 = vector.multi_reduction <add>, %46, %cst_19 [1] : vector<8x128xf32> to vector<8xf32>
    %48 = vector.shape_cast %47 : vector<8xf32> to vector<8x1xf32>
    %49 = arith.addf %44, %48 : vector<8x1xf32>
    %c0_20 = arith.constant 0 : index
    %c0_21 = arith.constant 0 : index
    %50 = vector.load %arg8[%c0_20, %c0_21] : memref<8x1xf32, #tpu.memory_space<vmem>>, vector<8x1xf32>
    tpu.vector_store %arg8[%c0_20, %c0_21], %49 {strides = array<i32>} : memref<8x1xf32, #tpu.memory_space<vmem>>, vector<8x1xf32>,
    %c0_i32_22 = arith.constant 0 : i32
    %51 = arith.cmpi eq, %arg1, %c0_i32_22 : i32
    %52 = arith.extui %51 : i1 to i32
    %c0_i32_23 = arith.constant 0 : i32
    %53 = arith.cmpi ne, %52, %c0_i32_23 : i32
    scf.if %53 {
      %c0_24 = arith.constant 0 : index
      %c0_25 = arith.constant 0 : index
      %54 = vector.load %arg6[%c0_24, %c0_25] : memref<8x1xf32, #tpu.memory_space<vmem>>, vector<8x1xf32>
      %c0_26 = arith.constant 0 : index
      %c0_27 = arith.constant 0 : index
      %55 = vector.load %arg7[%c0_26, %c0_27] : memref<8x1xf32, #tpu.memory_space<vmem>>, vector<8x1xf32>
      %56 = math.log %55 : vector<8x1xf32>
      %57 = arith.addf %54, %56 : vector<8x1xf32>
      %c0_28 = arith.constant 0 : index
      %c0_29 = arith.constant 0 : index
      %58 = vector.load %arg8[%c0_28, %c0_29] : memref<8x1xf32, #tpu.memory_space<vmem>>, vector<8x1xf32>
      %59 = arith.subf %57, %58 : vector<8x1xf32>
      %c8_i32_30 = arith.constant 8 : i32
      %60 = arith.muli %arg0, %c8_i32_30 : i32
      %61 = tpu.iota {dimensions = array<i32: 0>} : vector<8x1xi32>
      %62 = vector.broadcast %60 : i32 to vector<8x1xi32>
      %63 = arith.addi %62, %61 : vector<8x1xi32>
      %c8_i32_31 = arith.constant 8 : i32
      %64 = vector.broadcast %c8_i32_31 : i32 to vector<8x1xi32>
      %65 = arith.cmpi slt, %63, %64 : vector<8x1xi32>
      %cst_32 = arith.constant 0.000000e+00 : f32
      %66 = vector.broadcast %cst_32 : f32 to vector<8x1xf32>
      %67 = arith.select %65, %59, %66 : vector<8x1xi1>, vector<8x1xf32>
      %68 = vector.shape_cast %67 : vector<8x1xf32> to vector<1x8x1xf32>
      %cst_33 = arith.constant dense<0.000000e+00> : vector<1xf32>
      %69 = vector.multi_reduction <add>, %68, %cst_33 [1, 2] : vector<1x8x1xf32> to vector<1xf32>
      %70 = vector.shape_cast %69 : vector<1xf32> to vector<1x1x1xf32>
      %71 = vector.extract %70[0, 0, 0] : f32 from vector<1x1x1xf32>
      %72 = vector.broadcast %71 : f32 to vector<8x128xf32>
      %c0_34 = arith.constant 0 : index
      %c0_35 = arith.constant 0 : index
      %73 = vector.load %arg5[%c0_34, %c0_35] : memref<8x128xf32, #tpu.memory_space<vmem>>, vector<8x128xf32>
      tpu.vector_store %arg5[%c0_34, %c0_35], %72 {strides = array<i32>} : memref<8x128xf32, #tpu.memory_space<vmem>>, vector<8x128xf32>,
    } else {
    }
    return
  }
  func.func @transform_0(%arg0: i32, %arg1: i32) -> i32 {
    %c0_i32 = arith.constant 0 : i32
    %c0_i32_0 = arith.constant 0 : i32
    return %c0_i32 : i32
  }
  func.func @transform_1(%arg0: i32, %arg1: i32) -> (i32, i32) {
    %c0_i32 = arith.constant 0 : i32
    %c0_i32_0 = arith.constant 0 : i32
    %c0_i32_1 = arith.constant 0 : i32
    return %c0_i32, %c0_i32_0 : i32, i32
  }
  func.func @transform_2(%arg0: i32, %arg1: i32) -> (i32, i32) {
    %c0_i32 = arith.constant 0 : i32
    return %arg0, %arg1 : i32, i32
  }
  func.func @transform_3(%arg0: i32, %arg1: i32) -> (i32, i32) {
    %c0_i32 = arith.constant 0 : i32
    %c0_i32_0 = arith.constant 0 : i32
    return %arg0, %c0_i32 : i32, i32
  }
}

</mosaic_0001>

<llo_original>
// kernel: tpu_custom_call.1
$region0: #{tpu_custom_call.1}
  #allocation0 [shape = 'u32[]', space=smem, size = 0x4, offset = 0x4, fixed_abs, tag = 'smem constant byte address 0x4 - core index']
  #allocation1 [shape = 'u32[144,128]{1,0:T(1,128)}', space=vmem, size = 0x12000, scoped, tag = 'internal scratch']
  #allocation2 [shape = 'f32[8,1]{1,0:T(8,128)}', space=vmem, size = 0x1000, scoped, tag = 'scratch operand']
  #allocation3 [shape = 'f32[8,1]{1,0:T(8,128)}', space=vmem, size = 0x1000, scoped, tag = 'scratch operand']
  #allocation4 [shape = 'f32[8,1]{1,0:T(8,128)}', space=vmem, size = 0x1000, scoped, tag = 'scratch operand']
  %s0 = inlined_call_operand.vmem [shape: f32[2], index: 0, kind: input, shape index: {}]
  %s1 = inlined_call_operand.vmem [shape: s32[8,1], index: 1, kind: input, shape index: {}]
  %s2 = inlined_call_operand.vmem [shape: f32[8,128], index: 2, kind: input, shape index: {}]
  %s3 = inlined_call_operand.hbm [shape: f32[8,128], index: 3, kind: output, shape index: {}]
  %s4 = sld [smem:[#allocation0]]
  $region34: #{tpu_custom_call.1} parent=0
    _
  %s6 = ssub.s32 1, %s4
  %s7 = scalar_select 0, %s6, %s4
  $region1: #{tpu_custom_call.1} parent=0
    #allocation5 [shape = 'u8[512]{0}', space=smem, size = 0x200, scoped, tag = 'input window, operand 0, single buffered']
    #allocation6 [shape = 's32[1]{0}', space=sflag, size = 0x4, scoped, tag = 'scoped memory for tpu_custom_call.1']
    #allocation7 [shape = 's32[1]{0}', space=sflag, size = 0x4, scoped, tag = 'scoped memory for tpu_custom_call.1']
    #allocation8 [shape = 'u8[4096]{0}', space=vmem, size = 0x1000, scoped, tag = 'output window, operand 0, single buffered']
    %8 = vsyncpa [#allocation7], 0
    %9 = vsyncpa [#allocation6], 0
    // Predicated region
    $region2: #{tpu_custom_call.1} parent=1 // pred_check
      _
    $region3: #{tpu_custom_call.1} parent=1 // pred_check_branch
      %11 = sbr.rel (0) target = $region5
    $region4: #{tpu_custom_call.1} parent=1 // pred_region
      %s13 = ssub.s32 16, 16
      %14 = vsyncadd [#allocation7], %s13
      %s16 = sshll.u32 %s0, 4
      %s17 = int_to_ptr.vmem [resolvable:$true] %s16
      %19 = dma.vmem_to_smem %s17, 16, [#allocation5], [#allocation7]
    $region5: #{tpu_custom_call.1} parent=1 // pred_fallthru
      _
    // Predicated region
    $region6: #{tpu_custom_call.1} parent=1 // pred_check
      _
    $region7: #{tpu_custom_call.1} parent=1 // pred_check_branch
      %21 = sbr.rel (0) target = $region9
    $region8: #{tpu_custom_call.1} parent=1 // pred_region
      _
    $region9: #{tpu_custom_call.1} parent=1 // pred_fallthru
      _
    // Predicated region
    $region10: #{tpu_custom_call.1} parent=1 // pred_check
      _
    $region11: #{tpu_custom_call.1} parent=1 // pred_check_branch
      %23 = sbr.rel (0) target = $region13
    $region12: #{tpu_custom_call.1} parent=1 // pred_region
      _
    $region13: #{tpu_custom_call.1} parent=1 // pred_fallthru
      _
    // Predicated region
    $region14: #{tpu_custom_call.1} parent=1 // pred_check
      _
    $region15: #{tpu_custom_call.1} parent=1 // pred_check_branch
      %25 = sbr.rel (0) target = $region17
    $region16: #{tpu_custom_call.1} parent=1 // pred_region
      %26 = dma.done [#allocation7], 16
    $region17: #{tpu_custom_call.1} parent=1 // pred_fallthru
      _
    %27 = sfence
    %s28 = sld [smem:[#allocation5]]
    %s29 = sld [smem:[#allocation5 + $0x1]]
    %p30 = scmp.eq.s32.totalorder 0, 0
    // Predicated region
    $region18: #{tpu_custom_call.1} parent=1 // pred_check
      %p31 = pneg %p30
    $region19: #{tpu_custom_call.1} parent=1 // pred_check_branch
      %33 = sbr.rel (%p31) target = $region21
    $region20: #{tpu_custom_call.1} parent=1 // pred_region
      %vm34 = vcmask 7168
      %35 = vst.msk [vmem:[#allocation2] sm:$0xff] %vm34, -inf
      %36 = vst.msk [vmem:[#allocation3] sm:$0xff] %vm34, 0.0
      %37 = vst.msk [vmem:[#allocation4] sm:$0xff] %vm34, 0.0
    $region21: #{tpu_custom_call.1} parent=1 // pred_fallthru
      _
    %v38 = vld [vmem:[%s2] sm:$0xff]
    %v39 = vstv %s28
    %v40 = vmul.f32 %v38, %v39
    %v41 = vstv %s29
    %v42 = vadd.f32 %v40, %v41
    %v43 = vmul.f32 %v42, 1.442695
    %v44 = vpow.pop %v43
    %v45 = vlaneseq
    %v46 = vand.u32 %v45, 127
    %s47 = smul.u32 0, 128
    %v48 = vstv %s47
    %v49 = vadd.s32 %v46, %v48
    %vm50 = vcmp.lt.s32.totalorder %v49, 8
    %v51 = vsel %vm50, %v42, -inf
    %52 = vmax.xlane.f32.xlu0 %v51
    %v53 = vpop.xlane.xlu0 %52
    %v54 = vmul.f32 %v53, 1.442695
    %v55 = vpow.pop %v54
    %v56 = vld [vmem:[#allocation2] sm:$0xff]
    %v57 = vmax.f32 %v56, %v55
    %59 = vset.pattern.permute.xlu0 0
    %60 = vperm.xlu0 %59, %v57
    %v61 = vpop.permute.xlu0 %60
    %v63 = vsub.f32 %v44, %v61
    %v64 = vmul.f32 %v63, 1.442695
    %v65 = vpow.pop %v64
    %v66 = vsel %vm50, %v65, 0.0
    %v67 = vld [vmem:[#allocation3] sm:$0xff]
    %v68 = vsub.f32 %v56, %v57
    %v69 = vmul.f32 %v68, 1.442695
    %v70 = vpow.pop %v69
    %v71 = vmul.f32 %v67, %v70
    %72 = vadd.xlane.f32.xlu0 %v66
    %v73 = vpop.xlane.xlu0 %72
    %v74 = vadd.f32 %v71, %v73
    %vm75 = vcmask 7168
    %76 = vst.msk [vmem:[#allocation3] sm:$0xff] %vm75, %v74
    %77 = vst.msk [vmem:[#allocation2] sm:$0xff] %vm75, %v57
    %s78 = smul.u32 0, 8
    %s79 = scalar_lea.vmem %s1, %s78
    %v80 = vld [vmem:[%s79] sm:$0xff]
    %81 = vset.pattern.permute.xlu0 0
    %82 = vperm.xlu0 %81, %v80
    %v83 = vpop.permute.xlu0 %82
    %vm84 = vcmp.eq.s32.totalorder %v49, %v83
    %v85 = vld [vmem:[#allocation4] sm:$0xff]
    %v86 = vsel %vm84, %v44, 0.0
    %87 = vadd.xlane.f32.xlu0 %v86
    %v88 = vpop.xlane.xlu0 %87
    %v89 = vadd.f32 %v85, %v88
    %90 = vst.msk [vmem:[#allocation4] sm:$0xff] %vm75, %v89
    // Predicated region
    $region22: #{tpu_custom_call.1} parent=1 // pred_check
      %p91 = pneg %p30
    $region23: #{tpu_custom_call.1} parent=1 // pred_check_branch
      %93 = sbr.rel (%p91) target = $region25
    $region24: #{tpu_custom_call.1} parent=1 // pred_region
      %v94 = vld [vmem:[#allocation2] sm:$0xff]
      %v95 = vld [vmem:[#allocation3] sm:$0xff]
      %v96 = vlog2.pop %v95
      %v97 = vmul.f32 %v96, 0.6931472
      %v98 = vadd.f32 %v94, %v97
      %v99 = vld [vmem:[#allocation4] sm:$0xff]
      %v100 = vsub.f32 %v98, %v99
      %v101 = vlaneseq
      %v102 = vshrl.u32 %v101, 7
      %v103 = vstv %s78
      %v104 = vadd.s32 %v103, %v102
      %vm105 = vcmp.lt.s32.totalorder %v104, 8
      %v106 = vsel %vm105, %v100, 0.0
      %v107 = vsel %vm75, %v106, 0.0
      %108 = vadd.xlane.f32.xlu0 %v107
      %v109 = vpop.xlane.xlu0 %108
      %v110 = vrot.slane %v109, 4
      %v111 = vadd.f32 %v109, %v110
      %v112 = vrot.slane %v111, 2
      %v113 = vadd.f32 %v111, %v112
      %v114 = vrot.slane %v113, 1
      %v115 = vadd.f32 %v113, %v114
      %s116 = vtos %v115
      %v117 = vstv %s116
      %118 = vst [vmem:[#allocation8] sm:$0xff] %v117
    $region25: #{tpu_custom_call.1} parent=1 // pred_fallthru
      _
    // Predicated region
    $region26: #{tpu_custom_call.1} parent=1 // pred_check
      _
    $region27: #{tpu_custom_call.1} parent=1 // pred_check_branch
      %120 = sbr.rel (0) target = $region29
    $region28: #{tpu_custom_call.1} parent=1 // pred_region
      %s122 = ssub.s32 128, 128
      %123 = vsyncadd [#allocation6], %s122
      %s125 = sshll.u32 [#allocation8], 4
      %s126 = int_to_ptr.vmem [resolvable:$true] %s125
      %128 = dma.vmem_to_hbm [thread:$0]  %s126, 128, %s3, [#allocation6]
    $region29: #{tpu_custom_call.1} parent=1 // pred_fallthru
      _
    // Predicated region
    $region30: #{tpu_custom_call.1} parent=1 // pred_check
      _
    $region31: #{tpu_custom_call.1} parent=1 // pred_check_branch
      %130 = sbr.rel (0) target = $region33
    $region32: #{tpu_custom_call.1} parent=1 // pred_region
      %131 = dma.done [#allocation6], 128
    $region33: #{tpu_custom_call.1} parent=1 // pred_fallthru
      _
    %132 = vsyncpa [#allocation6], 1
    %133 = vsyncpa [#allocation7], 1

</llo_original>
